<compile_context>
chip_gen: v5e
topology: v5e:2x2
jax: 0.10.0
libtpu: 0.0.40
codegen_flags: <defaults>
</compile_context>

<pallas_src>
import functools

import jax
import jax.numpy as jnp
from jax.experimental import pallas as pl
from jax.experimental.pallas import tpu as pltpu


def _round_up(n, m):
    return ((n + m - 1) // m) * m


def exchange_bot_kernel(x_ref,
                        w1_ref, b1_ref,
                        w2_ref, b2_ref,
                        w3_ref, b3_ref,
                        w4_ref, b4_ref,
                        out_ref):
    # x: (TB, I) fp32 straight from HBM; cast to bf16 in-register for the MXU.
    x = x_ref[...].astype(jnp.bfloat16)

    # features: Linear -> ReLU
    h = jnp.dot(x, w1_ref[...], preferred_element_type=jnp.float32) + b1_ref[...]
    h = jnp.maximum(h, 0.0).astype(jnp.bfloat16)                  # (TB, 2I_pad)

    # features: Linear -> Dropout (identity in eval) -> ReLU
    h = jnp.dot(h, w2_ref[...], preferred_element_type=jnp.float32) + b2_ref[...]
    h = jnp.maximum(h, 0.0).astype(jnp.bfloat16)                  # (TB, 4I_pad)

    # classifier: Linear -> ReLU
    h = jnp.dot(h, w3_ref[...], preferred_element_type=jnp.float32) + b3_ref[...]
    h = jnp.maximum(h, 0.0).astype(jnp.bfloat16)                  # (TB, 2I_pad)

    # classifier: Linear (logits): fp32 accumulate, bf16 lane-dense store.
    out = jnp.dot(h, w4_ref[...], preferred_element_type=jnp.float32) + b4_ref[...]
    out_ref[...] = out.astype(out_ref.dtype)                      # (TB, O_pad)


def prepare_params(params):
    """One-time prep: pad feature dims to 128-lane multiples, cast weights to bf16.

    w1 keeps its true K (= input_size) rows so the raw fp32 input can be fed to
    the kernel unpadded; later K dims are padded to match the padded activations.
    Zero padding is exact (zeros contribute nothing to the dots; ReLU(0) = 0).
    """
    I = params["w1"].shape[0]
    H1 = params["w1"].shape[1]
    H2 = params["w2"].shape[1]
    H3 = params["w3"].shape[1]
    O = params["w4"].shape[1]
    H1p, H2p, H3p, Op = (_round_up(d, 128) for d in (H1, H2, H3, O))

    def pad2(a, rows, cols, dtype):
        a = a.astype(dtype)
        return jnp.pad(a, ((0, rows - a.shape[0]), (0, cols - a.shape[1])))

    prep = {
        "w1": pad2(params["w1"], I,   H1p, jnp.bfloat16),
        "w2": pad2(params["w2"], H1p, H2p, jnp.bfloat16),
        "w3": pad2(params["w3"], H2p, H3p, jnp.bfloat16),
        "w4": pad2(params["w4"], H3p, Op,  jnp.bfloat16),
        "b1": pad2(params["b1"], 1, H1p, jnp.float32),
        "b2": pad2(params["b2"], 1, H2p, jnp.float32),
        "b3": pad2(params["b3"], 1, H3p, jnp.float32),
        "b4": pad2(params["b4"], 1, Op,  jnp.float32),
    }
    return prep, O


@functools.partial(jax.jit, static_argnames=("output_size", "block_rows"))
def exchange_bot_forward(x, prep, *, output_size, block_rows=1024):
    """x: (B, input_size) float32, unpadded. prep: output of prepare_params."""
    B, I = x.shape
    Op = prep["w4"].shape[1]

    # Batch tile: split B evenly (bounds padding waste), round to 16 sublanes
    # (safe for the bf16 output tile), and keep >=2 grid steps when B > 8 so
    # v7x's two TensorCores both get a share of the ("parallel",) batch axis.
    n_tiles = max(1, pl.cdiv(B, block_rows))
    if B > 8:
        n_tiles = max(n_tiles, 2)
    TB = min(_round_up(pl.cdiv(B, n_tiles), 16), _round_up(B, 8))
    grid = (pl.cdiv(B, TB),)

    def resident_spec(shape):
        # Constant block index -> stays VMEM-resident across the whole grid.
        # TODO(synk): pipeline_mode=pl.Buffered(1) would drop the redundant
        # second buffer for these constant blocks; VMEM is nowhere near
        # binding here (~3 MB), so it is omitted to keep lowering simple.
        return pl.BlockSpec(shape, lambda i: (0, 0))

    flops = 2 * B * (I * prep["w1"].shape[1]
                     + prep["w2"].shape[0] * prep["w2"].shape[1]
                     + prep["w3"].shape[0] * prep["w3"].shape[1]
                     + prep["w4"].shape[0] * Op)
    bytes_accessed = (x.size * x.dtype.itemsize
                      + sum(v.size * v.dtype.itemsize for v in prep.values())
                      + B * Op * 2)

    out_padded = pl.pallas_call(
        exchange_bot_kernel,
        out_shape=jax.ShapeDtypeStruct((B, Op), jnp.bfloat16),
        grid=grid,
        in_specs=[
            pl.BlockSpec((TB, I), lambda i: (i, 0)),   # x: streamed over batch
            resident_spec(prep["w1"].shape), resident_spec(prep["b1"].shape),
            resident_spec(prep["w2"].shape), resident_spec(prep["b2"].shape),
            resident_spec(prep["w3"].shape), resident_spec(prep["b3"].shape),
            resident_spec(prep["w4"].shape), resident_spec(prep["b4"].shape),
        ],
        out_specs=pl.BlockSpec((TB, Op), lambda i: (i, 0)),
        compiler_params=pltpu.CompilerParams(
            dimension_semantics=("parallel",)),
        cost_estimate=pl.CostEstimate(
            flops=flops, transcendentals=0, bytes_accessed=bytes_accessed),
    )(x, prep["w1"], prep["b1"], prep["w2"], prep["b2"],
      prep["w3"], prep["b3"], prep["w4"], prep["b4"])

    # Tiny wrapper ops: slice padded lanes, upcast the (B, output_size) logits.
    return out_padded[:, :output_size].astype(jnp.float32)


def init_params(key, input_size, output_size):
    """Deterministic init matching the layer shapes of ExchangeBot.__init__."""
    dims = [
        (input_size, input_size * 2),      # features.0
        (input_size * 2, input_size * 4),  # features.2
        (input_size * 4, input_size * 2),  # classifier.0
        (input_size * 2, output_size),     # classifier.2
    ]
    params = {}
    for i, (fan_in, fan_out) in enumerate(dims, start=1):
        key, kw, kb = jax.random.split(key, 3)
        bound = 1.0 / (fan_in ** 0.5)
        # weights stored (in, out); PyTorch default: U(-1/sqrt(fan_in), 1/sqrt(fan_in))
        params[f"w{i}"] = jax.random.uniform(
            kw, (fan_in, fan_out), jnp.float32, -bound, bound)
        params[f"b{i}"] = jax.random.uniform(
            kb, (1, fan_out), jnp.float32, -bound, bound)
    return params


def reference_forward(x, params):
    """Pure-JAX reference with the same bf16-in / fp32-accumulate matmuls."""
    def mm(a, w):
        return jnp.dot(a.astype(jnp.bfloat16), w.astype(jnp.bfloat16),
                       preferred_element_type=jnp.float32)
    h = jnp.maximum(mm(x, params["w1"]) + params["b1"], 0.0)
    h = jnp.maximum(mm(h, params["w2"]) + params["b2"], 0.0)  # dropout = identity (eval)
    h = jnp.maximum(mm(h, params["w3"]) + params["b3"], 0.0)
    return mm(h, params["w4"]) + params["b4"]


if __name__ == "__main__":
    INPUT_SIZE = 43    # 1 rate + 40 EMAs + num stocks + buy price (per docstring)
    OUTPUT_SIZE = 3    # buy / hold / sell
    BATCH = 8

    key = jax.random.PRNGKey(0)
    key, kx = jax.random.split(key)
    x = jax.random.normal(kx, (BATCH, INPUT_SIZE), jnp.float32)
    params = init_params(key, INPUT_SIZE, OUTPUT_SIZE)

    # One-time parameter prep (pad + bf16 cast), hoisted out of the call path.
    prep, out_features = prepare_params(params)
    prep = jax.block_until_ready(prep)

    out = exchange_bot_forward(x, prep, output_size=out_features)
    out = jax.block_until_ready(out)

    ref = reference_forward(x, params)
    assert out.shape == (BATCH, OUTPUT_SIZE)
    assert jnp.allclose(out, ref, atol=3e-2, rtol=3e-2), "mismatch vs reference"

    print("KERNEL_OK")
</pallas_src>

<mosaic_0001>
module attributes {stable_mosaic.version = 11 : i64} {
  func.func @exchange_bot_kernel(%arg0: i32, %arg1: memref<8x43xf32, #tpu.memory_space<vmem>>, %arg2: memref<43x128xbf16, #tpu.memory_space<vmem>>, %arg3: memref<1x128xf32, #tpu.memory_space<vmem>>, %arg4: memref<128x256xbf16, #tpu.memory_space<vmem>>, %arg5: memref<1x256xf32, #tpu.memory_space<vmem>>, %arg6: memref<256x128xbf16, #tpu.memory_space<vmem>>, %arg7: memref<1x128xf32, #tpu.memory_space<vmem>>, %arg8: memref<128x128xbf16, #tpu.memory_space<vmem>>, %arg9: memref<1x128xf32, #tpu.memory_space<vmem>>, %arg10: memref<8x128xbf16, #tpu.memory_space<vmem>>) attributes {dimension_semantics = [#tpu.dimension_semantics<parallel>], iteration_bounds = array<i64: 1>, scalar_prefetch = 0 : i64, scratch_operands = 0 : i64, tpu.core_type = #tpu.core_type<tc>, window_params = [{transform_indices = @transform_0, window_bounds = array<i64: 8, 43>}, {pipeline_mode = #tpu.pipeline_mode<synchronous>, transform_indices = @transform_1, window_bounds = array<i64: 43, 128>}, {pipeline_mode = #tpu.pipeline_mode<synchronous>, transform_indices = @transform_2, window_bounds = array<i64: 1, 128>}, {pipeline_mode = #tpu.pipeline_mode<synchronous>, transform_indices = @transform_3, window_bounds = array<i64: 128, 256>}, {pipeline_mode = #tpu.pipeline_mode<synchronous>, transform_indices = @transform_4, window_bounds = array<i64: 1, 256>}, {pipeline_mode = #tpu.pipeline_mode<synchronous>, transform_indices = @transform_5, window_bounds = array<i64: 256, 128>}, {pipeline_mode = #tpu.pipeline_mode<synchronous>, transform_indices = @transform_6, window_bounds = array<i64: 1, 128>}, {pipeline_mode = #tpu.pipeline_mode<synchronous>, transform_indices = @transform_7, window_bounds = array<i64: 128, 128>}, {pipeline_mode = #tpu.pipeline_mode<synchronous>, transform_indices = @transform_8, window_bounds = array<i64: 1, 128>}, {transform_indices = @transform_9, window_bounds = array<i64: 8, 128>}]} {
    %c0 = arith.constant 0 : index
    %c0_0 = arith.constant 0 : index
    %0 = vector.load %arg1[%c0, %c0_0] : memref<8x43xf32, #tpu.memory_space<vmem>>, vector<8x43xf32>
    %1 = arith.truncf %0 : vector<8x43xf32> to vector<8x43xbf16>
    %c0_1 = arith.constant 0 : index
    %c0_2 = arith.constant 0 : index
    %2 = vector.load %arg2[%c0_1, %c0_2] : memref<43x128xbf16, #tpu.memory_space<vmem>>, vector<43x128xbf16>
    %cst = arith.constant dense<0.000000e+00> : vector<8x128xf32>
    %3 = tpu.matmul %1, %2, %cst {dimension_numbers = #tpu.dot_dimension_numbers<[1], [0], [0], [1], [0, 0, 1, 1], [], []>} : vector<8x43xbf16>, vector<43x128xbf16>, vector<8x128xf32> -> vector<8x128xf32>
    %c0_3 = arith.constant 0 : index
    %c0_4 = arith.constant 0 : index
    %4 = vector.load %arg3[%c0_3, %c0_4] : memref<1x128xf32, #tpu.memory_space<vmem>>, vector<1x128xf32>
    %5 = vector.broadcast %4 : vector<1x128xf32> to vector<8x128xf32>
    %6 = arith.addf %3, %5 : vector<8x128xf32>
    %cst_5 = arith.constant 0.000000e+00 : f32
    %7 = vector.broadcast %cst_5 : f32 to vector<8x128xf32>
    %8 = arith.maximumf %6, %7 : vector<8x128xf32>
    %9 = arith.truncf %8 : vector<8x128xf32> to vector<8x128xbf16>
    %c0_6 = arith.constant 0 : index
    %c0_7 = arith.constant 0 : index
    %10 = vector.load %arg4[%c0_6, %c0_7] : memref<128x256xbf16, #tpu.memory_space<vmem>>, vector<128x256xbf16>
    %cst_8 = arith.constant dense<0.000000e+00> : vector<8x256xf32>
    %11 = tpu.matmul %9, %10, %cst_8 {dimension_numbers = #tpu.dot_dimension_numbers<[1], [0], [0], [1], [0, 0, 1, 1], [], []>} : vector<8x128xbf16>, vector<128x256xbf16>, vector<8x256xf32> -> vector<8x256xf32>
    %c0_9 = arith.constant 0 : index
    %c0_10 = arith.constant 0 : index
    %12 = vector.load %arg5[%c0_9, %c0_10] : memref<1x256xf32, #tpu.memory_space<vmem>>, vector<1x256xf32>
    %13 = vector.broadcast %12 : vector<1x256xf32> to vector<8x256xf32>
    %14 = arith.addf %11, %13 : vector<8x256xf32>
    %cst_11 = arith.constant 0.000000e+00 : f32
    %15 = vector.broadcast %cst_11 : f32 to vector<8x256xf32>
    %16 = arith.maximumf %14, %15 : vector<8x256xf32>
    %17 = arith.truncf %16 : vector<8x256xf32> to vector<8x256xbf16>
    %c0_12 = arith.constant 0 : index
    %c0_13 = arith.constant 0 : index
    %18 = vector.load %arg6[%c0_12, %c0_13] : memref<256x128xbf16, #tpu.memory_space<vmem>>, vector<256x128xbf16>
    %cst_14 = arith.constant dense<0.000000e+00> : vector<8x128xf32>
    %19 = tpu.matmul %17, %18, %cst_14 {dimension_numbers = #tpu.dot_dimension_numbers<[1], [0], [0], [1], [0, 0, 1, 1], [], []>} : vector<8x256xbf16>, vector<256x128xbf16>, vector<8x128xf32> -> vector<8x128xf32>
    %c0_15 = arith.constant 0 : index
    %c0_16 = arith.constant 0 : index
    %20 = vector.load %arg7[%c0_15, %c0_16] : memref<1x128xf32, #tpu.memory_space<vmem>>, vector<1x128xf32>
    %21 = vector.broadcast %20 : vector<1x128xf32> to vector<8x128xf32>
    %22 = arith.addf %19, %21 : vector<8x128xf32>
    %cst_17 = arith.constant 0.000000e+00 : f32
    %23 = vector.broadcast %cst_17 : f32 to vector<8x128xf32>
    %24 = arith.maximumf %22, %23 : vector<8x128xf32>
    %25 = arith.truncf %24 : vector<8x128xf32> to vector<8x128xbf16>
    %c0_18 = arith.constant 0 : index
    %c0_19 = arith.constant 0 : index
    %26 = vector.load %arg8[%c0_18, %c0_19] : memref<128x128xbf16, #tpu.memory_space<vmem>>, vector<128x128xbf16>
    %cst_20 = arith.constant dense<0.000000e+00> : vector<8x128xf32>
    %27 = tpu.matmul %25, %26, %cst_20 {dimension_numbers = #tpu.dot_dimension_numbers<[1], [0], [0], [1], [0, 0, 1, 1], [], []>} : vector<8x128xbf16>, vector<128x128xbf16>, vector<8x128xf32> -> vector<8x128xf32>
    %c0_21 = arith.constant 0 : index
    %c0_22 = arith.constant 0 : index
    %28 = vector.load %arg9[%c0_21, %c0_22] : memref<1x128xf32, #tpu.memory_space<vmem>>, vector<1x128xf32>
    %29 = vector.broadcast %28 : vector<1x128xf32> to vector<8x128xf32>
    %30 = arith.addf %27, %29 : vector<8x128xf32>
    %31 = arith.truncf %30 : vector<8x128xf32> to vector<8x128xbf16>
    %c0_23 = arith.constant 0 : index
    %c0_24 = arith.constant 0 : index
    %32 = vector.load %arg10[%c0_23, %c0_24] : memref<8x128xbf16, #tpu.memory_space<vmem>>, vector<8x128xbf16>
    tpu.vector_store %arg10[%c0_23, %c0_24], %31 {strides = array<i32>} : memref<8x128xbf16, #tpu.memory_space<vmem>>, vector<8x128xbf16>,
    return
  }
  func.func @transform_0(%arg0: i32) -> (i32, i32) {
    %c0_i32 = arith.constant 0 : i32
    %c0_i32_0 = arith.constant 0 : i32
    return %arg0, %c0_i32 : i32, i32
  }
  func.func @transform_1(%arg0: i32) -> (i32, i32) {
    %c0_i32 = arith.constant 0 : i32
    %c0_i32_0 = arith.constant 0 : i32
    %c0_i32_1 = arith.constant 0 : i32
    return %c0_i32, %c0_i32_0 : i32, i32
  }
  func.func @transform_2(%arg0: i32) -> (i32, i32) {
    %c0_i32 = arith.constant 0 : i32
    %c0_i32_0 = arith.constant 0 : i32
    %c0_i32_1 = arith.constant 0 : i32
    return %c0_i32, %c0_i32_0 : i32, i32
  }
  func.func @transform_3(%arg0: i32) -> (i32, i32) {
    %c0_i32 = arith.constant 0 : i32
    %c0_i32_0 = arith.constant 0 : i32
    %c0_i32_1 = arith.constant 0 : i32
    return %c0_i32, %c0_i32_0 : i32, i32
  }
  func.func @transform_4(%arg0: i32) -> (i32, i32) {
    %c0_i32 = arith.constant 0 : i32
    %c0_i32_0 = arith.constant 0 : i32
    %c0_i32_1 = arith.constant 0 : i32
    return %c0_i32, %c0_i32_0 : i32, i32
  }
  func.func @transform_5(%arg0: i32) -> (i32, i32) {
    %c0_i32 = arith.constant 0 : i32
    %c0_i32_0 = arith.constant 0 : i32
    %c0_i32_1 = arith.constant 0 : i32
    return %c0_i32, %c0_i32_0 : i32, i32
  }
  func.func @transform_6(%arg0: i32) -> (i32, i32) {
    %c0_i32 = arith.constant 0 : i32
    %c0_i32_0 = arith.constant 0 : i32
    %c0_i32_1 = arith.constant 0 : i32
    return %c0_i32, %c0_i32_0 : i32, i32
  }
  func.func @transform_7(%arg0: i32) -> (i32, i32) {
    %c0_i32 = arith.constant 0 : i32
    %c0_i32_0 = arith.constant 0 : i32
    %c0_i32_1 = arith.constant 0 : i32
    return %c0_i32, %c0_i32_0 : i32, i32
  }
  func.func @transform_8(%arg0: i32) -> (i32, i32) {
    %c0_i32 = arith.constant 0 : i32
    %c0_i32_0 = arith.constant 0 : i32
    %c0_i32_1 = arith.constant 0 : i32
    return %c0_i32, %c0_i32_0 : i32, i32
  }
  func.func @transform_9(%arg0: i32) -> (i32, i32) {
    %c0_i32 = arith.constant 0 : i32
    %c0_i32_0 = arith.constant 0 : i32
    return %arg0, %c0_i32 : i32, i32
  }
}

</mosaic_0001>

<llo_original>
// kernel: exchange_bot_forward.1
$region0: #{exchange_bot_forward.1}
  #allocation0 [shape = 'u32[]', space=smem, size = 0x4, offset = 0x4, fixed_abs, tag = 'smem constant byte address 0x4 - core index']
  #allocation1 [shape = 'u32[72,128]{1,0:T(1,128)}', space=vmem, size = 0x9000, scoped, tag = 'internal scratch']
  %s0 = inlined_call_operand.hbm [shape: f32[8,43], index: 0, kind: input, shape index: {}]
  %s1 = inlined_call_operand.hbm [shape: bf16[43,128], index: 1, kind: input, shape index: {}]
  %s2 = inlined_call_operand.hbm [shape: f32[1,128], index: 2, kind: input, shape index: {}]
  %s3 = inlined_call_operand.hbm [shape: bf16[128,256], index: 3, kind: input, shape index: {}]
  %s4 = inlined_call_operand.hbm [shape: f32[1,256], index: 4, kind: input, shape index: {}]
  %s5 = inlined_call_operand.hbm [shape: bf16[256,128], index: 5, kind: input, shape index: {}]
  %s6 = inlined_call_operand.vmem [shape: f32[1,128], index: 6, kind: input, shape index: {}]
  %s7 = inlined_call_operand.hbm [shape: bf16[128,128], index: 7, kind: input, shape index: {}]
  %s8 = inlined_call_operand.vmem [shape: f32[1,128], index: 8, kind: input, shape index: {}]
  %s9 = inlined_call_operand.vmem [shape: bf16[8,128], index: 9, kind: output, shape index: {}]
  %s10 = sld [smem:[#allocation0]]
  $region74: #{exchange_bot_forward.1} parent=0
    _
  %s12 = ssub.s32 1, %s10
  %s13 = scalar_select 0, %s12, %s10
  $region1: #{exchange_bot_forward.1} parent=0
    #allocation2 [shape = 'u8[4096]{0}', space=vmem, size = 0x1000, scoped, tag = 'input window, operand 0, single buffered']
    #allocation3 [shape = 's32[1]{0}', space=sflag, size = 0x4, scoped, tag = 'scoped memory for exchange_bot_forward.1']
    #allocation4 [shape = 'u8[12288]{0}', space=vmem, size = 0x3000, scoped, tag = 'input window, operand 1, single buffered']
    #allocation5 [shape = 's32[1]{0}', space=sflag, size = 0x4, scoped, tag = 'scoped memory for exchange_bot_forward.1']
    #allocation6 [shape = 'u8[512]{0}', space=vmem, size = 0x400, scoped, tag = 'input window, operand 2, single buffered']
    #allocation7 [shape = 'u8[65536]{0}', space=vmem, size = 0x10000, scoped, tag = 'input window, operand 3, single buffered']
    #allocation8 [shape = 's32[1]{0}', space=sflag, size = 0x4, scoped, tag = 'scoped memory for exchange_bot_forward.1']
    #allocation9 [shape = 'u8[1024]{0}', space=vmem, size = 0x400, scoped, tag = 'input window, operand 4, single buffered']
    #allocation10 [shape = 'u8[65536]{0}', space=vmem, size = 0x10000, scoped, tag = 'input window, operand 5, single buffered']
    #allocation11 [shape = 's32[1]{0}', space=sflag, size = 0x4, scoped, tag = 'scoped memory for exchange_bot_forward.1']
    #allocation12 [shape = 'u8[32768]{0}', space=vmem, size = 0x8000, scoped, tag = 'input window, operand 7, single buffered']
    %14 = vsyncpa [#allocation3], 0
    %15 = vsyncpa [#allocation5], 0
    %16 = vsyncpa [#allocation8], 0
    %17 = vsyncpa [#allocation11], 0
    // Predicated region
    $region2: #{exchange_bot_forward.1} parent=1 // pred_check
      _
    $region3: #{exchange_bot_forward.1} parent=1 // pred_check_branch
      %19 = sbr.rel (0) target = $region5
    $region4: #{exchange_bot_forward.1} parent=1 // pred_region
      %21 = vsyncadd [#allocation3], 0
      %s23 = sshll.u32 %s0, 4
      %s24 = int_to_ptr.hbm [resolvable:$true] %s23
      %s25 = sshll.u32 [#allocation2], 4
      %s26 = int_to_ptr.vmem [resolvable:$true] %s25
      %28 = dma.hbm_to_vmem [thread:$0]  %s24, 128, %s26, [#allocation3]
    $region5: #{exchange_bot_forward.1} parent=1 // pred_fallthru
      _
    // Predicated region
    $region6: #{exchange_bot_forward.1} parent=1 // pred_check
      _
    $region7: #{exchange_bot_forward.1} parent=1 // pred_check_branch
      %30 = sbr.rel (0) target = $region9
    $region8: #{exchange_bot_forward.1} parent=1 // pred_region
      %32 = vsyncadd [#allocation5], 0
      %s33 = sshll.u32 %s1, 4
      %s34 = int_to_ptr.hbm [resolvable:$true] %s33
      %s35 = sshll.u32 [#allocation4], 4
      %s36 = int_to_ptr.vmem [resolvable:$true] %s35
      %41 = dma.hbm_to_vmem [thread:$0]  %s34, 384, %s36, [#allocation5], 64, 64, 4
    $region9: #{exchange_bot_forward.1} parent=1 // pred_fallthru
      _
    // Predicated region
    $region10: #{exchange_bot_forward.1} parent=1 // pred_check
      _
    $region11: #{exchange_bot_forward.1} parent=1 // pred_check_branch
      %43 = sbr.rel (0) target = $region13
    $region12: #{exchange_bot_forward.1} parent=1 // pred_region
      %45 = vsyncadd [#allocation5], 0
      %s47 = sshll.u32 %s2, 4
      %s48 = int_to_ptr.hbm [resolvable:$true] %s47
      %s49 = sshll.u32 [#allocation6], 4
      %s50 = int_to_ptr.vmem [resolvable:$true] %s49
      %52 = dma.hbm_to_vmem [thread:$0]  %s48, 16, %s50, [#allocation5]
    $region13: #{exchange_bot_forward.1} parent=1 // pred_fallthru
      _
    // Predicated region
    $region14: #{exchange_bot_forward.1} parent=1 // pred_check
      _
    $region15: #{exchange_bot_forward.1} parent=1 // pred_check_branch
      %54 = sbr.rel (0) target = $region17
    $region16: #{exchange_bot_forward.1} parent=1 // pred_region
      %56 = vsyncadd [#allocation8], 0
      %s57 = sshll.u32 %s3, 4
      %s58 = int_to_ptr.hbm [resolvable:$true] %s57
      %s59 = sshll.u32 [#allocation7], 4
      %s60 = int_to_ptr.vmem [resolvable:$true] %s59
      %65 = dma.hbm_to_vmem [thread:$0]  %s58, 2048, %s60, [#allocation8], 128, 128, 8
    $region17: #{exchange_bot_forward.1} parent=1 // pred_fallthru
      _
    // Predicated region
    $region18: #{exchange_bot_forward.1} parent=1 // pred_check
      _
    $region19: #{exchange_bot_forward.1} parent=1 // pred_check_branch
      %67 = sbr.rel (0) target = $region21
    $region20: #{exchange_bot_forward.1} parent=1 // pred_region
      %69 = vsyncadd [#allocation8], 0
      %s71 = sshll.u32 %s4, 4
      %s72 = int_to_ptr.hbm [resolvable:$true] %s71
      %s73 = sshll.u32 [#allocation9], 4
      %s74 = int_to_ptr.vmem [resolvable:$true] %s73
      %76 = dma.hbm_to_vmem [thread:$0]  %s72, 32, %s74, [#allocation8]
    $region21: #{exchange_bot_forward.1} parent=1 // pred_fallthru
      _
    // Predicated region
    $region22: #{exchange_bot_forward.1} parent=1 // pred_check
      _
    $region23: #{exchange_bot_forward.1} parent=1 // pred_check_branch
      %78 = sbr.rel (0) target = $region25
    $region24: #{exchange_bot_forward.1} parent=1 // pred_region
      %80 = vsyncadd [#allocation11], 0
      %s81 = sshll.u32 %s5, 4
      %s82 = int_to_ptr.hbm [resolvable:$true] %s81
      %s83 = sshll.u32 [#allocation10], 4
      %s84 = int_to_ptr.vmem [resolvable:$true] %s83
      %89 = dma.hbm_to_vmem [thread:$0]  %s82, 2048, %s84, [#allocation11], 64, 64, 4
    $region25: #{exchange_bot_forward.1} parent=1 // pred_fallthru
      _
    // Predicated region
    $region26: #{exchange_bot_forward.1} parent=1 // pred_check
      _
    $region27: #{exchange_bot_forward.1} parent=1 // pred_check_branch
      %91 = sbr.rel (0) target = $region29
    $region28: #{exchange_bot_forward.1} parent=1 // pred_region
      _
    $region29: #{exchange_bot_forward.1} parent=1 // pred_fallthru
      _
    // Predicated region
    $region30: #{exchange_bot_forward.1} parent=1 // pred_check
      _
    $region31: #{exchange_bot_forward.1} parent=1 // pred_check_branch
      %93 = sbr.rel (0) target = $region33
    $region32: #{exchange_bot_forward.1} parent=1 // pred_region
      %95 = vsyncadd [#allocation11], 0
      %s96 = sshll.u32 %s7, 4
      %s97 = int_to_ptr.hbm [resolvable:$true] %s96
      %s98 = sshll.u32 [#allocation12], 4
      %s99 = int_to_ptr.vmem [resolvable:$true] %s98
      %104 = dma.hbm_to_vmem [thread:$0]  %s97, 1024, %s99, [#allocation11], 64, 64, 4
    $region33: #{exchange_bot_forward.1} parent=1 // pred_fallthru
      _
    // Predicated region
    $region34: #{exchange_bot_forward.1} parent=1 // pred_check
      _
    $region35: #{exchange_bot_forward.1} parent=1 // pred_check_branch
      %106 = sbr.rel (0) target = $region37
    $region36: #{exchange_bot_forward.1} parent=1 // pred_region
      _
    $region37: #{exchange_bot_forward.1} parent=1 // pred_fallthru
      _
    // Predicated region
    $region38: #{exchange_bot_forward.1} parent=1 // pred_check
      _
    $region39: #{exchange_bot_forward.1} parent=1 // pred_check_branch
      %108 = sbr.rel (0) target = $region41
    $region40: #{exchange_bot_forward.1} parent=1 // pred_region
      %110 = dma.done [#allocation3], 128
    $region41: #{exchange_bot_forward.1} parent=1 // pred_fallthru
      _
    // Predicated region
    $region42: #{exchange_bot_forward.1} parent=1 // pred_check
      _
    $region43: #{exchange_bot_forward.1} parent=1 // pred_check_branch
      %112 = sbr.rel (0) target = $region45
    $region44: #{exchange_bot_forward.1} parent=1 // pred_region
      %114 = dma.done [#allocation5], 384
    $region45: #{exchange_bot_forward.1} parent=1 // pred_fallthru
      _
    // Predicated region
    $region46: #{exchange_bot_forward.1} parent=1 // pred_check
      _
    $region47: #{exchange_bot_forward.1} parent=1 // pred_check_branch
      %116 = sbr.rel (0) target = $region49
    $region48: #{exchange_bot_forward.1} parent=1 // pred_region
      %118 = dma.done [#allocation5], 16
    $region49: #{exchange_bot_forward.1} parent=1 // pred_fallthru
      _
    // Predicated region
    $region50: #{exchange_bot_forward.1} parent=1 // pred_check
      _
    $region51: #{exchange_bot_forward.1} parent=1 // pred_check_branch
      %120 = sbr.rel (0) target = $region53
    $region52: #{exchange_bot_forward.1} parent=1 // pred_region
      %122 = dma.done [#allocation8], 2048
    $region53: #{exchange_bot_forward.1} parent=1 // pred_fallthru
      _
    // Predicated region
    $region54: #{exchange_bot_forward.1} parent=1 // pred_check
      _
    $region55: #{exchange_bot_forward.1} parent=1 // pred_check_branch
      %124 = sbr.rel (0) target = $region57
    $region56: #{exchange_bot_forward.1} parent=1 // pred_region
      %126 = dma.done [#allocation8], 32
    $region57: #{exchange_bot_forward.1} parent=1 // pred_fallthru
      _
    // Predicated region
    $region58: #{exchange_bot_forward.1} parent=1 // pred_check
      _
    $region59: #{exchange_bot_forward.1} parent=1 // pred_check_branch
      %128 = sbr.rel (0) target = $region61
    $region60: #{exchange_bot_forward.1} parent=1 // pred_region
      %130 = dma.done [#allocation11], 2048
    $region61: #{exchange_bot_forward.1} parent=1 // pred_fallthru
      _
    // Predicated region
    $region62: #{exchange_bot_forward.1} parent=1 // pred_check
      _
    $region63: #{exchange_bot_forward.1} parent=1 // pred_check_branch
      %132 = sbr.rel (0) target = $region65
    $region64: #{exchange_bot_forward.1} parent=1 // pred_region
      %134 = dma.done [#allocation11], 1024
    $region65: #{exchange_bot_forward.1} parent=1 // pred_fallthru
      _
    %v136 = vld [vmem:[#allocation2] sm:$0xff]
    %v137 = vpack.c.bf16 %v136, %v136
    %v138 = vld [vmem:[#allocation4] sm:$0xf]
    %v139 = vld [vmem:[#allocation4 + $0x4] sm:$0xf]
    %v140 = vld [vmem:[#allocation4 + $0x8] sm:$0xf]
    %v141 = vld [vmem:[#allocation4 + $0xc] sm:$0xf]
    %v142 = vld [vmem:[#allocation4 + $0x10] sm:$0xf]
    %v143 = vld [vmem:[#allocation4 + $0x14] sm:$0x3]
    %v144 = vld [vmem:[#allocation6] sm:$0x1]
    %v146 = vperm.slane %v144, 0
    %v154 = vunpack.c.l.b16 %v138
    %v155 = vunpack.c.l.b16 %v139
    %v156 = vunpack.c.l.b16 %v140
    %v157 = vunpack.c.l.b16 %v141
    %v158 = vunpack.c.l.b16 %v142
    %v159 = vunpack.c.l.b16 %v143
    %v160 = vpack.c.b16 %v155, %v154
    %v161 = vpack.c.b16 %v157, %v156
    %v162 = vpack.c.b16 %v159, %v158
    %vm165 = vcmask 351232
    %v167 = vsel %vm165, %v137, 0
    %vm169 = vcmask 1044480
    %vm170 = vcmask 1045504
    %v171 = vsel %vm169, 4294967295, 65535
    %v172 = vsel %vm170, %v171, 0
    %v174 = vand.u32 %v162, %v172
    %176 = vmatpush.bf16.msra.mxu0 0
    %177 = vmatpush.bf16.msra.mxu0 0
    %178 = vmatpush.bf16.msra.mxu0 0
    %179 = vmatpush.bf16.msra.mxu0 0
    %180 = vmatpush.bf16.msra.mxu0 0
    %181 = vmatpush.bf16.msra.mxu0 %v174
    %182 = vmatpush.bf16.msra.mxu0 %v161
    %183 = vmatpush.bf16.msra.mxu0 %v160
    %184 = vmatmul.bf16.gmra.mxu0 %v167
    %v185 = vpop.f32.mrf.mxu0
    %v186 = vadd.f32 %v146, %v185
    %v187 = vpop.f32.mrf.mxu0
    %188 = vdwg.mxu0
    %v189 = vmax.f32 %v186, 0.0
    %v190 = vpack.c.bf16 %v189, %v189
    %v191 = vld [vmem:[#allocation7] sm:$0xff]
    %v192 = vld [vmem:[#allocation7 + $0x8] sm:$0xff]
    %v193 = vld [vmem:[#allocation7 + $0x10] sm:$0xff]
    %v194 = vld [vmem:[#allocation7 + $0x18] sm:$0xff]
    %v195 = vld [vmem:[#allocation7 + $0x20] sm:$0xff]
    %v196 = vld [vmem:[#allocation7 + $0x28] sm:$0xff]
    %v197 = vld [vmem:[#allocation7 + $0x30] sm:$0xff]
    %v198 = vld [vmem:[#allocation7 + $0x38] sm:$0xff]
    %v199 = vld [vmem:[#allocation7 + $0x40] sm:$0xff]
    %v200 = vld [vmem:[#allocation7 + $0x48] sm:$0xff]
    %v201 = vld [vmem:[#allocation7 + $0x50] sm:$0xff]
    %v202 = vld [vmem:[#allocation7 + $0x58] sm:$0xff]
    %v203 = vld [vmem:[#allocation7 + $0x60] sm:$0xff]
    %v204 = vld [vmem:[#allocation7 + $0x68] sm:$0xff]
    %v205 = vld [vmem:[#allocation7 + $0x70] sm:$0xff]
    %v206 = vld [vmem:[#allocation7 + $0x78] sm:$0xff]
    %v207 = vld [vmem:[#allocation9] sm:$0x3]
    %v209 = vperm.slane %v207, 0
    %v210 = vperm.slane %v207, 1
    %v229 = vunpack.c.l.b16 %v191
    %v230 = vunpack.c.h.b16 %v191
    %v231 = vunpack.c.l.b16 %v192
    %v232 = vunpack.c.h.b16 %v192
    %v233 = vunpack.c.l.b16 %v193
    %v234 = vunpack.c.h.b16 %v193
    %v235 = vunpack.c.l.b16 %v194
    %v236 = vunpack.c.h.b16 %v194
    %v237 = vunpack.c.l.b16 %v195
    %v238 = vunpack.c.h.b16 %v195
    %v239 = vunpack.c.l.b16 %v196
    %v240 = vunpack.c.h.b16 %v196
    %v241 = vunpack.c.l.b16 %v197
    %v242 = vunpack.c.h.b16 %v197
    %v243 = vunpack.c.l.b16 %v198
    %v244 = vunpack.c.h.b16 %v198
    %v245 = vunpack.c.l.b16 %v199
    %v246 = vunpack.c.h.b16 %v199
    %v247 = vunpack.c.l.b16 %v200
    %v248 = vunpack.c.h.b16 %v200
    %v249 = vunpack.c.l.b16 %v201
    %v250 = vunpack.c.h.b16 %v201
    %v251 = vunpack.c.l.b16 %v202
    %v252 = vunpack.c.h.b16 %v202
    %v253 = vunpack.c.l.b16 %v203
    %v254 = vunpack.c.h.b16 %v203
    %v255 = vunpack.c.l.b16 %v204
    %v256 = vunpack.c.h.b16 %v204
    %v257 = vunpack.c.l.b16 %v205
    %v258 = vunpack.c.h.b16 %v205
    %v259 = vunpack.c.l.b16 %v206
    %v260 = vunpack.c.h.b16 %v206
    %v261 = vpack.c.b16 %v231, %v229
    %v262 = vpack.c.b16 %v232, %v230
    %v263 = vpack.c.b16 %v235, %v233
    %v264 = vpack.c.b16 %v236, %v234
    %v265 = vpack.c.b16 %v239, %v237
    %v266 = vpack.c.b16 %v240, %v238
    %v267 = vpack.c.b16 %v243, %v241
    %v268 = vpack.c.b16 %v244, %v242
    %v269 = vpack.c.b16 %v247, %v245
    %v270 = vpack.c.b16 %v248, %v246
    %v271 = vpack.c.b16 %v251, %v249
    %v272 = vpack.c.b16 %v252, %v250
    %v273 = vpack.c.b16 %v255, %v253
    %v274 = vpack.c.b16 %v256, %v254
    %v275 = vpack.c.b16 %v259, %v257
    %v276 = vpack.c.b16 %v260, %v258
    %293 = vmatpush.bf16.msra.mxu0 %v275
    %294 = vmatpush.bf16.msra.mxu0 %v273
    %295 = vmatpush.bf16.msra.mxu0 %v271
    %296 = vmatpush.bf16.msra.mxu0 %v269
    %297 = vmatpush.bf16.msra.mxu0 %v267
    %298 = vmatpush.bf16.msra.mxu0 %v265
    %299 = vmatpush.bf16.msra.mxu0 %v263
    %300 = vmatpush.bf16.msra.mxu0 %v261
    %301 = vmatmul.bf16.gmra.mxu0 %v190
    %v302 = vpop.f32.mrf.mxu0
    %v303 = vadd.f32 %v209, %v302
    %v304 = vpop.f32.mrf.mxu0
    %305 = vdwg.mxu0
    %306 = vmatpush.bf16.msra.mxu0 %v276
    %307 = vmatpush.bf16.msra.mxu0 %v274
    %308 = vmatpush.bf16.msra.mxu0 %v272
    %309 = vmatpush.bf16.msra.mxu0 %v270
    %310 = vmatpush.bf16.msra.mxu0 %v268
    %311 = vmatpush.bf16.msra.mxu0 %v266
    %312 = vmatpush.bf16.msra.mxu0 %v264
    %313 = vmatpush.bf16.msra.mxu0 %v262
    %314 = vmatmul.bf16.gmra.mxu0 %v190
    %v315 = vpop.f32.mrf.mxu0
    %v316 = vadd.f32 %v210, %v315
    %v317 = vpop.f32.mrf.mxu0
    %318 = vdwg.mxu0
    %v319 = vmax.f32 %v303, 0.0
    %v320 = vmax.f32 %v316, 0.0
    %v321 = vpack.c.bf16 %v319, %v319
    %v322 = vpack.c.bf16 %v320, %v320
    %v323 = vld [vmem:[#allocation10] sm:$0xf]
    %v324 = vld [vmem:[#allocation10 + $0x4] sm:$0xf]
    %v325 = vld [vmem:[#allocation10 + $0x8] sm:$0xf]
    %v326 = vld [vmem:[#allocation10 + $0xc] sm:$0xf]
    %v327 = vld [vmem:[#allocation10 + $0x10] sm:$0xf]
    %v328 = vld [vmem:[#allocation10 + $0x14] sm:$0xf]
    %v329 = vld [vmem:[#allocation10 + $0x18] sm:$0xf]
    %v330 = vld [vmem:[#allocation10 + $0x1c] sm:$0xf]
    %v331 = vld [vmem:[#allocation10 + $0x20] sm:$0xf]
    %v332 = vld [vmem:[#allocation10 + $0x24] sm:$0xf]
    %v333 = vld [vmem:[#allocation10 + $0x28] sm:$0xf]
    %v334 = vld [vmem:[#allocation10 + $0x2c] sm:$0xf]
    %v335 = vld [vmem:[#allocation10 + $0x30] sm:$0xf]
    %v336 = vld [vmem:[#allocation10 + $0x34] sm:$0xf]
    %v337 = vld [vmem:[#allocation10 + $0x38] sm:$0xf]
    %v338 = vld [vmem:[#allocation10 + $0x3c] sm:$0xf]
    %v339 = vld [vmem:[#allocation10 + $0x40] sm:$0xf]
    %v340 = vld [vmem:[#allocation10 + $0x44] sm:$0xf]
    %v341 = vld [vmem:[#allocation10 + $0x48] sm:$0xf]
    %v342 = vld [vmem:[#allocation10 + $0x4c] sm:$0xf]
    %v343 = vld [vmem:[#allocation10 + $0x50] sm:$0xf]
    %v344 = vld [vmem:[#allocation10 + $0x54] sm:$0xf]
    %v345 = vld [vmem:[#allocation10 + $0x58] sm:$0xf]
    %v346 = vld [vmem:[#allocation10 + $0x5c] sm:$0xf]
    %v347 = vld [vmem:[#allocation10 + $0x60] sm:$0xf]
    %v348 = vld [vmem:[#allocation10 + $0x64] sm:$0xf]
    %v349 = vld [vmem:[#allocation10 + $0x68] sm:$0xf]
    %v350 = vld [vmem:[#allocation10 + $0x6c] sm:$0xf]
    %v351 = vld [vmem:[#allocation10 + $0x70] sm:$0xf]
    %v352 = vld [vmem:[#allocation10 + $0x74] sm:$0xf]
    %v353 = vld [vmem:[#allocation10 + $0x78] sm:$0xf]
    %v354 = vld [vmem:[#allocation10 + $0x7c] sm:$0xf]
    %v355 = vld [vmem:[%s6] sm:$0x1]
    %v357 = vperm.slane %v355, 0
    %v391 = vunpack.c.l.b16 %v323
    %v392 = vunpack.c.l.b16 %v324
    %v393 = vunpack.c.l.b16 %v325
    %v394 = vunpack.c.l.b16 %v326
    %v395 = vunpack.c.l.b16 %v327
    %v396 = vunpack.c.l.b16 %v328
    %v397 = vunpack.c.l.b16 %v329
    %v398 = vunpack.c.l.b16 %v330
    %v399 = vunpack.c.l.b16 %v331
    %v400 = vunpack.c.l.b16 %v332
    %v401 = vunpack.c.l.b16 %v333
    %v402 = vunpack.c.l.b16 %v334
    %v403 = vunpack.c.l.b16 %v335
    %v404 = vunpack.c.l.b16 %v336
    %v405 = vunpack.c.l.b16 %v337
    %v406 = vunpack.c.l.b16 %v338
    %v407 = vunpack.c.l.b16 %v339
    %v408 = vunpack.c.l.b16 %v340
    %v409 = vunpack.c.l.b16 %v341
    %v410 = vunpack.c.l.b16 %v342
    %v411 = vunpack.c.l.b16 %v343
    %v412 = vunpack.c.l.b16 %v344
    %v413 = vunpack.c.l.b16 %v345
    %v414 = vunpack.c.l.b16 %v346
    %v415 = vunpack.c.l.b16 %v347
    %v416 = vunpack.c.l.b16 %v348
    %v417 = vunpack.c.l.b16 %v349
    %v418 = vunpack.c.l.b16 %v350
    %v419 = vunpack.c.l.b16 %v351
    %v420 = vunpack.c.l.b16 %v352
    %v421 = vunpack.c.l.b16 %v353
    %v422 = vunpack.c.l.b16 %v354
    %v423 = vpack.c.b16 %v392, %v391
    %v424 = vpack.c.b16 %v394, %v393
    %v425 = vpack.c.b16 %v396, %v395
    %v426 = vpack.c.b16 %v398, %v397
    %v427 = vpack.c.b16 %v400, %v399
    %v428 = vpack.c.b16 %v402, %v401
    %v429 = vpack.c.b16 %v404, %v403
    %v430 = vpack.c.b16 %v406, %v405
    %v431 = vpack.c.b16 %v408, %v407
    %v432 = vpack.c.b16 %v410, %v409
    %v433 = vpack.c.b16 %v412, %v411
    %v434 = vpack.c.b16 %v414, %v413
    %v435 = vpack.c.b16 %v416, %v415
    %v436 = vpack.c.b16 %v418, %v417
    %v437 = vpack.c.b16 %v420, %v419
    %v438 = vpack.c.b16 %v422, %v421
    %455 = vmatpush.bf16.msra.mxu0 %v430
    %456 = vmatpush.bf16.msra.mxu0 %v429
    %457 = vmatpush.bf16.msra.mxu0 %v428
    %458 = vmatpush.bf16.msra.mxu0 %v427
    %459 = vmatpush.bf16.msra.mxu0 %v426
    %460 = vmatpush.bf16.msra.mxu0 %v425
    %461 = vmatpush.bf16.msra.mxu0 %v424
    %462 = vmatpush.bf16.msra.mxu0 %v423
    %463 = vmatmul.bf16.gmra.mxu0 %v321
    %v464 = vpop.f32.mrf.mxu0
    %v465 = vadd.f32 %v357, %v464
    %v466 = vpop.f32.mrf.mxu0
    %467 = vdwg.mxu0
    %468 = vmatpush.bf16.msra.mxu0 %v438
    %469 = vmatpush.bf16.msra.mxu0 %v437
    %470 = vmatpush.bf16.msra.mxu0 %v436
    %471 = vmatpush.bf16.msra.mxu0 %v435
    %472 = vmatpush.bf16.msra.mxu0 %v434
    %473 = vmatpush.bf16.msra.mxu0 %v433
    %474 = vmatpush.bf16.msra.mxu0 %v432
    %475 = vmatpush.bf16.msra.mxu0 %v431
    %476 = vmatmul.bf16.gmra.mxu0 %v322
    %v477 = vpop.f32.mrf.mxu0
    %v478 = vadd.f32 %v465, %v477
    %v479 = vpop.f32.mrf.mxu0
    %480 = vdwg.mxu0
    %v481 = vmax.f32 %v478, 0.0
    %v482 = vpack.c.bf16 %v481, %v481
    %v483 = vld [vmem:[#allocation12] sm:$0xf]
    %v484 = vld [vmem:[#allocation12 + $0x4] sm:$0xf]
    %v485 = vld [vmem:[#allocation12 + $0x8] sm:$0xf]
    %v486 = vld [vmem:[#allocation12 + $0xc] sm:$0xf]
    %v487 = vld [vmem:[#allocation12 + $0x10] sm:$0xf]
    %v488 = vld [vmem:[#allocation12 + $0x14] sm:$0xf]
    %v489 = vld [vmem:[#allocation12 + $0x18] sm:$0xf]
    %v490 = vld [vmem:[#allocation12 + $0x1c] sm:$0xf]
    %v491 = vld [vmem:[#allocation12 + $0x20] sm:$0xf]
    %v492 = vld [vmem:[#allocation12 + $0x24] sm:$0xf]
    %v493 = vld [vmem:[#allocation12 + $0x28] sm:$0xf]
    %v494 = vld [vmem:[#allocation12 + $0x2c] sm:$0xf]
    %v495 = vld [vmem:[#allocation12 + $0x30] sm:$0xf]
    %v496 = vld [vmem:[#allocation12 + $0x34] sm:$0xf]
    %v497 = vld [vmem:[#allocation12 + $0x38] sm:$0xf]
    %v498 = vld [vmem:[#allocation12 + $0x3c] sm:$0xf]
    %v499 = vld [vmem:[%s8] sm:$0x1]
    %v501 = vperm.slane %v499, 0
    %v519 = vunpack.c.l.b16 %v483
    %v520 = vunpack.c.l.b16 %v484
    %v521 = vunpack.c.l.b16 %v485
    %v522 = vunpack.c.l.b16 %v486
    %v523 = vunpack.c.l.b16 %v487
    %v524 = vunpack.c.l.b16 %v488
    %v525 = vunpack.c.l.b16 %v489
    %v526 = vunpack.c.l.b16 %v490
    %v527 = vunpack.c.l.b16 %v491
    %v528 = vunpack.c.l.b16 %v492
    %v529 = vunpack.c.l.b16 %v493
    %v530 = vunpack.c.l.b16 %v494
    %v531 = vunpack.c.l.b16 %v495
    %v532 = vunpack.c.l.b16 %v496
    %v533 = vunpack.c.l.b16 %v497
    %v534 = vunpack.c.l.b16 %v498
    %v535 = vpack.c.b16 %v520, %v519
    %v536 = vpack.c.b16 %v522, %v521
    %v537 = vpack.c.b16 %v524, %v523
    %v538 = vpack.c.b16 %v526, %v525
    %v539 = vpack.c.b16 %v528, %v527
    %v540 = vpack.c.b16 %v530, %v529
    %v541 = vpack.c.b16 %v532, %v531
    %v542 = vpack.c.b16 %v534, %v533
    %551 = vmatpush.bf16.msra.mxu0 %v542
    %552 = vmatpush.bf16.msra.mxu0 %v541
    %553 = vmatpush.bf16.msra.mxu0 %v540
    %554 = vmatpush.bf16.msra.mxu0 %v539
    %555 = vmatpush.bf16.msra.mxu0 %v538
    %556 = vmatpush.bf16.msra.mxu0 %v537
    %557 = vmatpush.bf16.msra.mxu0 %v536
    %558 = vmatpush.bf16.msra.mxu0 %v535
    %559 = vmatmul.bf16.gmra.mxu0 %v482
    %v560 = vpop.f32.mrf.mxu0
    %v561 = vadd.f32 %v501, %v560
    %v562 = vpop.f32.mrf.mxu0
    %563 = vdwg.mxu0
    %v564 = vpack.c.bf16 %v561, %v561
    %565 = vst [vmem:[%s9] sm:$0xf] %v564
    // Predicated region
    $region66: #{exchange_bot_forward.1} parent=1 // pred_check
      _
    $region67: #{exchange_bot_forward.1} parent=1 // pred_check_branch
      %567 = sbr.rel (0) target = $region69
    $region68: #{exchange_bot_forward.1} parent=1 // pred_region
      _
    $region69: #{exchange_bot_forward.1} parent=1 // pred_fallthru
      _
    // Predicated region
    $region70: #{exchange_bot_forward.1} parent=1 // pred_check
      _
    $region71: #{exchange_bot_forward.1} parent=1 // pred_check_branch
      %569 = sbr.rel (0) target = $region73
    $region72: #{exchange_bot_forward.1} parent=1 // pred_region
      _
    $region73: #{exchange_bot_forward.1} parent=1 // pred_fallthru
      _
    %570 = vsyncpa [#allocation3], 1
    %571 = vsyncpa [#allocation5], 1
    %572 = vsyncpa [#allocation8], 1
    %573 = vsyncpa [#allocation11], 1

</llo_original>
